<compile_context>
chip_gen: v6e
topology: v6e:2x2x1
jax: 0.10.0
libtpu: 0.0.40
codegen_flags: <defaults>
</compile_context>

<pallas_src>
import math

import numpy as np
import jax
import jax.numpy as jnp
from jax.experimental import pallas as pl
from jax.experimental.pallas import tpu as pltpu

PYRAMIDS = (1, 2, 3, 6)


# ----------------------------------------------------------------------------
# Host-side operator construction (deterministic, no learnable parameters).
# ----------------------------------------------------------------------------
def _adaptive_pool_matrix(in_size: int, bin_size: int) -> np.ndarray:
    """P[i, h] such that pooled = P @ x along one spatial axis (PyTorch rules)."""
    P = np.zeros((bin_size, in_size), dtype=np.float64)
    for i in range(bin_size):
        start = (i * in_size) // bin_size
        end = math.ceil((i + 1) * in_size / bin_size)
        P[i, start:end] = 1.0 / (end - start)
    return P


def _bilinear_upsample_matrix(bin_size: int, out_size: int) -> np.ndarray:
    """U[y, p] such that upsampled = U @ pooled (align_corners=True)."""
    U = np.zeros((out_size, bin_size), dtype=np.float64)
    for y in range(out_size):
        if out_size > 1 and bin_size > 1:
            src = y * (bin_size - 1) / (out_size - 1)
        else:
            src = 0.0
        i0 = int(math.floor(src))
        i1 = min(i0 + 1, bin_size - 1)
        frac = src - i0
        U[y, i0] += 1.0 - frac
        U[y, i1] += frac
    return U


def _build_lowrank_factors(H: int, W: int, pyramids, rpad: int):
    """L (HW, rpad), R (rpad, HW) with out_flat = x_flat + x_flat @ L @ R."""
    HW = H * W
    L = np.zeros((HW, rpad), dtype=np.float64)
    R = np.zeros((rpad, HW), dtype=np.float64)
    col = 0
    for b in pyramids:
        Ph = _adaptive_pool_matrix(H, b)          # (b, H)
        Pw = _adaptive_pool_matrix(W, b)          # (b, W)
        Uh = _bilinear_upsample_matrix(b, H)      # (H, b)
        Uw = _bilinear_upsample_matrix(b, W)      # (W, b)
        # (x @ kron(Ph^T, Pw^T))[n, i*b+j]      = (Ph @ X @ Pw^T)[i, j]   (pool)
        # (p @ kron(Uh^T, Uw^T))[n, h*W+w]      = (Uh @ P  @ Uw^T)[h, w]  (upsample)
        L[:, col:col + b * b] = np.kron(Ph.T, Pw.T)     # (HW, b*b)
        R[col:col + b * b, :] = np.kron(Uh.T, Uw.T)     # (b*b, HW)
        col += b * b
    return L.astype(np.float32), R.astype(np.float32)


# ----------------------------------------------------------------------------
# Tiling heuristics.
# ----------------------------------------------------------------------------
def _round_up(v: int, m: int) -> int:
    return ((v + m - 1) // m) * m


def _vmem_limit_bytes() -> int:
    """Generation-aware VMEM limit: ~54 MiB on v7x, ~109 MiB on v5e/v6e."""
    cap = 64 * 1024 * 1024                     # safe default (v7x per-TC size)
    try:
        info = pltpu.get_tpu_info()
        cap = int(getattr(info, "vmem_capacity_bytes", cap))
    except Exception:
        pass
    return int(cap * 0.85)


def _choose_bm(NC: int, HW: int, rpad: int, budget: int) -> int:
    """Row tile (number of (n, c) planes per grid step) under the VMEM budget."""
    fixed = 4 * HW * rpad * 4                  # L + R blocks, double-buffered
    per_row = (4 * HW + 2 * rpad) * 4          # x (2x) + out (2x) + temp (x @ L)
    bm = max(budget - fixed, 0) // per_row
    if NC <= 8:
        return NC                              # one full-extent block
    bm = min(bm, NC)
    if bm >= 256:
        bm = (bm // 256) * 256                 # MXU-friendly row multiple
    else:
        bm = max(8, (bm // 8) * 8)             # sublane-aligned
    # Keep >= 2 grid steps so v7x's two TensorCores both get work.  The
    # operator is VMEM-resident (constant index map => DMA elided), so the
    # extra step is ~free on single-TC chips (v5e/v6e) too.
    if NC >= 16 and pl.cdiv(NC, bm) < 2:
        bm = max(8, _round_up(pl.cdiv(NC, 2), 8))
    return bm


# ----------------------------------------------------------------------------
# Kernel: out = x + (x @ L) @ R     (single lane-dense store, width = HW)
# ----------------------------------------------------------------------------
def _ppm_lowrank_kernel(x_ref, l_ref, r_ref, o_ref):
    x = x_ref[...]
    t = jnp.dot(x, l_ref[...], preferred_element_type=jnp.float32)   # (bm, rpad)
    o_ref[...] = (x + jnp.dot(t, r_ref[...],
                              preferred_element_type=jnp.float32)).astype(o_ref.dtype)


# ----------------------------------------------------------------------------
# Wrapper.
# ----------------------------------------------------------------------------
def pyramid_pooling_module(x: jax.Array, pyramids=PYRAMIDS) -> jax.Array:
    """x: (N, C, H, W) float32 -> (N, C, H, W) float32 (PyTorch PPM semantics)."""
    N, C, H, W = x.shape
    NC, HW = N * C, H * W

    rank = sum(b * b for b in pyramids)
    rpad = max(128, _round_up(rank, 128))              # lane-dense factor width

    L_np, R_np = _build_lowrank_factors(H, W, pyramids, rpad)
    L_op = jnp.asarray(L_np)                           # (HW, rpad) f32
    R_op = jnp.asarray(R_np)                           # (rpad, HW) f32

    x_flat = x.reshape(NC, HW)                         # free reshape

    vmem_limit = _vmem_limit_bytes()
    bm = _choose_bm(NC, HW, rpad, int(vmem_limit * 0.9))
    row_steps = pl.cdiv(NC, bm)                        # ragged last block: masked

    out_flat = pl.pallas_call(
        _ppm_lowrank_kernel,
        out_shape=jax.ShapeDtypeStruct((NC, HW), x.dtype),
        grid_spec=pltpu.PrefetchScalarGridSpec(
            num_scalar_prefetch=0,
            grid=(row_steps,),
            in_specs=[
                pl.BlockSpec((bm, HW), lambda i: (i, 0)),      # x rows
                pl.BlockSpec((HW, rpad), lambda i: (0, 0)),    # L (resident)
                pl.BlockSpec((rpad, HW), lambda i: (0, 0)),    # R (resident)
            ],
            out_specs=pl.BlockSpec((bm, HW), lambda i: (i, 0)),
        ),
        compiler_params=pltpu.CompilerParams(
            dimension_semantics=("parallel",),
            vmem_limit_bytes=vmem_limit),
    )(x_flat, L_op, R_op)

    return out_flat.reshape(N, C, H, W)


# ----------------------------------------------------------------------------
# Pure numpy reference (direct adaptive pool + bilinear loops) for validation.
# ----------------------------------------------------------------------------
def _reference(x: np.ndarray, pyramids=PYRAMIDS) -> np.ndarray:
    N, C, H, W = x.shape
    feat = x.astype(np.float64).copy()
    for b in pyramids:
        pooled = np.zeros((N, C, b, b), dtype=np.float64)
        for i in range(b):
            hs, he = (i * H) // b, math.ceil((i + 1) * H / b)
            for j in range(b):
                ws, we = (j * W) // b, math.ceil((j + 1) * W / b)
                pooled[:, :, i, j] = x[:, :, hs:he, ws:we].mean(axis=(2, 3))
        up = np.zeros((N, C, H, W), dtype=np.float64)
        for y in range(H):
            sy = y * (b - 1) / (H - 1) if (H > 1 and b > 1) else 0.0
            y0 = int(math.floor(sy)); y1 = min(y0 + 1, b - 1); fy = sy - y0
            for xx in range(W):
                sx = xx * (b - 1) / (W - 1) if (W > 1 and b > 1) else 0.0
                x0 = int(math.floor(sx)); x1 = min(x0 + 1, b - 1); fx = sx - x0
                up[:, :, y, xx] = (
                    (1 - fy) * (1 - fx) * pooled[:, :, y0, x0]
                    + (1 - fy) * fx * pooled[:, :, y0, x1]
                    + fy * (1 - fx) * pooled[:, :, y1, x0]
                    + fy * fx * pooled[:, :, y1, x1])
        feat = feat + up
    return feat.astype(np.float32)


if __name__ == "__main__":
    ppm = jax.jit(pyramid_pooling_module)

    # Canonical small shape (single full-extent row block).
    x1 = jax.random.normal(jax.random.PRNGKey(0), (2, 4, 16, 16), dtype=jnp.float32)
    out1 = jax.block_until_ready(ppm(x1))
    np.testing.assert_allclose(np.asarray(out1), _reference(np.asarray(x1)),
                               rtol=1e-4, atol=1e-4)

    # Odd spatial size (HW not a multiple of 128) + ragged last row block.
    x2 = jax.random.normal(jax.random.PRNGKey(0), (2, 5, 15, 17), dtype=jnp.float32)
    out2 = jax.block_until_ready(ppm(x2))
    np.testing.assert_allclose(np.asarray(out2), _reference(np.asarray(x2)),
                               rtol=1e-4, atol=1e-4)

    print("KERNEL_OK")
</pallas_src>

<mosaic_0001>
module attributes {stable_mosaic.version = 11 : i64} {
  func.func @_ppm_lowrank_kernel(%arg0: i32, %arg1: memref<8x256xf32, #tpu.memory_space<vmem>>, %arg2: memref<256x128xf32, #tpu.memory_space<vmem>>, %arg3: memref<128x256xf32, #tpu.memory_space<vmem>>, %arg4: memref<8x256xf32, #tpu.memory_space<vmem>>) attributes {dimension_semantics = [#tpu.dimension_semantics<parallel>], iteration_bounds = array<i64: 1>, scalar_prefetch = 0 : i64, scratch_operands = 0 : i64, tpu.core_type = #tpu.core_type<tc>, window_params = [{transform_indices = @transform_0, window_bounds = array<i64: 8, 256>}, {pipeline_mode = #tpu.pipeline_mode<synchronous>, transform_indices = @transform_1, window_bounds = array<i64: 256, 128>}, {pipeline_mode = #tpu.pipeline_mode<synchronous>, transform_indices = @transform_2, window_bounds = array<i64: 128, 256>}, {transform_indices = @transform_3, window_bounds = array<i64: 8, 256>}]} {
    %c0 = arith.constant 0 : index
    %c0_0 = arith.constant 0 : index
    %0 = vector.load %arg1[%c0, %c0_0] : memref<8x256xf32, #tpu.memory_space<vmem>>, vector<8x256xf32>
    %c0_1 = arith.constant 0 : index
    %c0_2 = arith.constant 0 : index
    %1 = vector.load %arg2[%c0_1, %c0_2] : memref<256x128xf32, #tpu.memory_space<vmem>>, vector<256x128xf32>
    %cst = arith.constant dense<0.000000e+00> : vector<8x128xf32>
    %2 = tpu.matmul %0, %1, %cst {dimension_numbers = #tpu.dot_dimension_numbers<[1], [0], [0], [1], [0, 0, 1, 1], [], []>} : vector<8x256xf32>, vector<256x128xf32>, vector<8x128xf32> -> vector<8x128xf32>
    %c0_3 = arith.constant 0 : index
    %c0_4 = arith.constant 0 : index
    %3 = vector.load %arg3[%c0_3, %c0_4] : memref<128x256xf32, #tpu.memory_space<vmem>>, vector<128x256xf32>
    %cst_5 = arith.constant dense<0.000000e+00> : vector<8x256xf32>
    %4 = tpu.matmul %2, %3, %cst_5 {dimension_numbers = #tpu.dot_dimension_numbers<[1], [0], [0], [1], [0, 0, 1, 1], [], []>} : vector<8x128xf32>, vector<128x256xf32>, vector<8x256xf32> -> vector<8x256xf32>
    %5 = arith.addf %0, %4 : vector<8x256xf32>
    %c0_6 = arith.constant 0 : index
    %c0_7 = arith.constant 0 : index
    %6 = vector.load %arg4[%c0_6, %c0_7] : memref<8x256xf32, #tpu.memory_space<vmem>>, vector<8x256xf32>
    tpu.vector_store %arg4[%c0_6, %c0_7], %5 {strides = array<i32>} : memref<8x256xf32, #tpu.memory_space<vmem>>, vector<8x256xf32>,
    return
  }
  func.func @transform_0(%arg0: i32) -> (i32, i32) {
    %c0_i32 = arith.constant 0 : i32
    %c0_i32_0 = arith.constant 0 : i32
    return %arg0, %c0_i32 : i32, i32
  }
  func.func @transform_1(%arg0: i32) -> (i32, i32) {
    %c0_i32 = arith.constant 0 : i32
    %c0_i32_0 = arith.constant 0 : i32
    %c0_i32_1 = arith.constant 0 : i32
    return %c0_i32, %c0_i32_0 : i32, i32
  }
  func.func @transform_2(%arg0: i32) -> (i32, i32) {
    %c0_i32 = arith.constant 0 : i32
    %c0_i32_0 = arith.constant 0 : i32
    %c0_i32_1 = arith.constant 0 : i32
    return %c0_i32, %c0_i32_0 : i32, i32
  }
  func.func @transform_3(%arg0: i32) -> (i32, i32) {
    %c0_i32 = arith.constant 0 : i32
    %c0_i32_0 = arith.constant 0 : i32
    return %arg0, %c0_i32 : i32, i32
  }
}

</mosaic_0001>

<llo_original>
// kernel: pyramid_pooling_module.1
$region0: #{pyramid_pooling_module.1}
  #allocation0 [shape = 'u32[]', space=smem, size = 0x4, offset = 0x4, fixed_abs, tag = 'smem constant byte address 0x4 - core index']
  #allocation1 [shape = 'u32[144,128]{1,0:T(1,128)}', space=vmem, size = 0x12000, scoped, tag = 'internal scratch']
  %s0 = inlined_call_operand.vmem [shape: f32[8,256], index: 0, kind: input, shape index: {}]
  %s1 = inlined_call_operand.hbm [shape: f32[256,128], index: 1, kind: input, shape index: {}]
  %s2 = inlined_call_operand.hbm [shape: f32[128,256], index: 2, kind: input, shape index: {}]
  %s3 = inlined_call_operand.vmem [shape: f32[8,256], index: 3, kind: output, shape index: {}]
  %s4 = sld [smem:[#allocation0]]
  $region30: #{pyramid_pooling_module.1} parent=0
    _
  %s6 = ssub.s32 1, %s4
  %s7 = scalar_select 0, %s6, %s4
  $region1: #{pyramid_pooling_module.1} parent=0
    #allocation2 [shape = 'u8[131072]{0}', space=vmem, size = 0x20000, scoped, tag = 'input window, operand 1, single buffered']
    #allocation3 [shape = 's32[1]{0}', space=sflag, size = 0x4, scoped, tag = 'scoped memory for pyramid_pooling_module.1']
    #allocation4 [shape = 'u8[131072]{0}', space=vmem, size = 0x20000, scoped, tag = 'input window, operand 2, single buffered']
    #allocation5 [shape = 's32[1]{0}', space=sflag, size = 0x4, scoped, tag = 'scoped memory for pyramid_pooling_module.1']
    %8 = vsyncpa [#allocation3], 0
    %9 = vsyncpa [#allocation5], 0
    // Predicated region
    $region2: #{pyramid_pooling_module.1} parent=1 // pred_check
      _
    $region3: #{pyramid_pooling_module.1} parent=1 // pred_check_branch
      %11 = sbr.rel (0) target = $region5
    $region4: #{pyramid_pooling_module.1} parent=1 // pred_region
      _
    $region5: #{pyramid_pooling_module.1} parent=1 // pred_fallthru
      _
    // Predicated region
    $region6: #{pyramid_pooling_module.1} parent=1 // pred_check
      _
    $region7: #{pyramid_pooling_module.1} parent=1 // pred_check_branch
      %13 = sbr.rel (0) target = $region9
    $region8: #{pyramid_pooling_module.1} parent=1 // pred_region
      %s15 = ssub.s32 4096, 4096
      %16 = vsyncadd [#allocation3], %s15
      %s17 = sshll.u32 [#allocation2], 4
      %s18 = int_to_ptr.vmem [resolvable:$true] %s17
      %23 = dma.hbm_to_vmem [thread:$0]  %s1, 4096, %s18, [#allocation3], 128, 128, 8
    $region9: #{pyramid_pooling_module.1} parent=1 // pred_fallthru
      _
    // Predicated region
    $region10: #{pyramid_pooling_module.1} parent=1 // pred_check
      _
    $region11: #{pyramid_pooling_module.1} parent=1 // pred_check_branch
      %25 = sbr.rel (0) target = $region13
    $region12: #{pyramid_pooling_module.1} parent=1 // pred_region
      %s27 = ssub.s32 4096, 4096
      %28 = vsyncadd [#allocation5], %s27
      %s29 = sshll.u32 [#allocation4], 4
      %s30 = int_to_ptr.vmem [resolvable:$true] %s29
      %35 = dma.hbm_to_vmem [thread:$0]  %s2, 4096, %s30, [#allocation5], 256, 256, 16
    $region13: #{pyramid_pooling_module.1} parent=1 // pred_fallthru
      _
    // Predicated region
    $region14: #{pyramid_pooling_module.1} parent=1 // pred_check
      _
    $region15: #{pyramid_pooling_module.1} parent=1 // pred_check_branch
      %37 = sbr.rel (0) target = $region17
    $region16: #{pyramid_pooling_module.1} parent=1 // pred_region
      %38 = dma.done [#allocation3], 4096
    $region17: #{pyramid_pooling_module.1} parent=1 // pred_fallthru
      _
    // Predicated region
    $region18: #{pyramid_pooling_module.1} parent=1 // pred_check
      _
    $region19: #{pyramid_pooling_module.1} parent=1 // pred_check_branch
      %40 = sbr.rel (0) target = $region21
    $region20: #{pyramid_pooling_module.1} parent=1 // pred_region
      %41 = dma.done [#allocation5], 4096
    $region21: #{pyramid_pooling_module.1} parent=1 // pred_fallthru
      _
    %v42 = vld [vmem:[%s0] sm:$0xff]
    %v43 = vld [vmem:[%s0 + $0x8] sm:$0xff]
    %v44 = vld [vmem:[#allocation2] sm:$0xff]
    %v45 = vld [vmem:[#allocation2 + $0x8] sm:$0xff]
    %v46 = vld [vmem:[#allocation2 + $0x10] sm:$0xff]
    %v47 = vld [vmem:[#allocation2 + $0x18] sm:$0xff]
    %v48 = vld [vmem:[#allocation2 + $0x20] sm:$0xff]
    %v49 = vld [vmem:[#allocation2 + $0x28] sm:$0xff]
    %v50 = vld [vmem:[#allocation2 + $0x30] sm:$0xff]
    %v51 = vld [vmem:[#allocation2 + $0x38] sm:$0xff]
    %v52 = vld [vmem:[#allocation2 + $0x40] sm:$0xff]
    %v53 = vld [vmem:[#allocation2 + $0x48] sm:$0xff]
    %v54 = vld [vmem:[#allocation2 + $0x50] sm:$0xff]
    %v55 = vld [vmem:[#allocation2 + $0x58] sm:$0xff]
    %v56 = vld [vmem:[#allocation2 + $0x60] sm:$0xff]
    %v57 = vld [vmem:[#allocation2 + $0x68] sm:$0xff]
    %v58 = vld [vmem:[#allocation2 + $0x70] sm:$0xff]
    %v59 = vld [vmem:[#allocation2 + $0x78] sm:$0xff]
    %v60 = vld [vmem:[#allocation2 + $0x80] sm:$0xff]
    %v61 = vld [vmem:[#allocation2 + $0x88] sm:$0xff]
    %v62 = vld [vmem:[#allocation2 + $0x90] sm:$0xff]
    %v63 = vld [vmem:[#allocation2 + $0x98] sm:$0xff]
    %v64 = vld [vmem:[#allocation2 + $0xa0] sm:$0xff]
    %v65 = vld [vmem:[#allocation2 + $0xa8] sm:$0xff]
    %v66 = vld [vmem:[#allocation2 + $0xb0] sm:$0xff]
    %v67 = vld [vmem:[#allocation2 + $0xb8] sm:$0xff]
    %v68 = vld [vmem:[#allocation2 + $0xc0] sm:$0xff]
    %v69 = vld [vmem:[#allocation2 + $0xc8] sm:$0xff]
    %v70 = vld [vmem:[#allocation2 + $0xd0] sm:$0xff]
    %v71 = vld [vmem:[#allocation2 + $0xd8] sm:$0xff]
    %v72 = vld [vmem:[#allocation2 + $0xe0] sm:$0xff]
    %v73 = vld [vmem:[#allocation2 + $0xe8] sm:$0xff]
    %v74 = vld [vmem:[#allocation2 + $0xf0] sm:$0xff]
    %v75 = vld [vmem:[#allocation2 + $0xf8] sm:$0xff]
    %76 = vmatprep.subr.mxu0 0.0
    %77 = vmatpush1.msra.mxu0 %v59
    %78 = vmatprep.subr.mxu0 0.0
    %79 = vmatpush1.msra.mxu0 %v58
    %80 = vmatprep.subr.mxu0 0.0
    %81 = vmatpush1.msra.mxu0 %v57
    %82 = vmatprep.subr.mxu0 0.0
    %83 = vmatpush1.msra.mxu0 %v56
    %84 = vmatprep.subr.mxu0 0.0
    %85 = vmatpush1.msra.mxu0 %v55
    %86 = vmatprep.subr.mxu0 0.0
    %87 = vmatpush1.msra.mxu0 %v54
    %88 = vmatprep.subr.mxu0 0.0
    %89 = vmatpush1.msra.mxu0 %v53
    %90 = vmatprep.subr.mxu0 0.0
    %91 = vmatpush1.msra.mxu0 %v52
    %92 = vmatprep.subr.mxu0 0.0
    %93 = vmatpush1.msra.mxu0 %v51
    %94 = vmatprep.subr.mxu0 0.0
    %95 = vmatpush1.msra.mxu0 %v50
    %96 = vmatprep.subr.mxu0 0.0
    %97 = vmatpush1.msra.mxu0 %v49
    %98 = vmatprep.subr.mxu0 0.0
    %99 = vmatpush1.msra.mxu0 %v48
    %100 = vmatprep.subr.mxu0 0.0
    %101 = vmatpush1.msra.mxu0 %v47
    %102 = vmatprep.subr.mxu0 0.0
    %103 = vmatpush1.msra.mxu0 %v46
    %104 = vmatprep.subr.mxu0 0.0
    %105 = vmatpush1.msra.mxu0 %v45
    %106 = vmatprep.subr.mxu0 0.0
    %107 = vmatpush1.msra.mxu0 %v44
    %108 = vmatprep.subr.mxu0 0.0
    %109 = vmatpush2.msra.mxu0 %v75
    %110 = vmatprep.subr.mxu0 0.0
    %111 = vmatpush2.msra.mxu0 %v74
    %112 = vmatprep.subr.mxu0 0.0
    %113 = vmatpush2.msra.mxu0 %v73
    %114 = vmatprep.subr.mxu0 0.0
    %115 = vmatpush2.msra.mxu0 %v72
    %116 = vmatprep.subr.mxu0 0.0
    %117 = vmatpush2.msra.mxu0 %v71
    %118 = vmatprep.subr.mxu0 0.0
    %119 = vmatpush2.msra.mxu0 %v70
    %120 = vmatprep.subr.mxu0 0.0
    %121 = vmatpush2.msra.mxu0 %v69
    %122 = vmatprep.subr.mxu0 0.0
    %123 = vmatpush2.msra.mxu0 %v68
    %124 = vmatprep.subr.mxu0 0.0
    %125 = vmatpush2.msra.mxu0 %v67
    %126 = vmatprep.subr.mxu0 0.0
    %127 = vmatpush2.msra.mxu0 %v66
    %128 = vmatprep.subr.mxu0 0.0
    %129 = vmatpush2.msra.mxu0 %v65
    %130 = vmatprep.subr.mxu0 0.0
    %131 = vmatpush2.msra.mxu0 %v64
    %132 = vmatprep.subr.mxu0 0.0
    %133 = vmatpush2.msra.mxu0 %v63
    %134 = vmatprep.subr.mxu0 0.0
    %135 = vmatpush2.msra.mxu0 %v62
    %136 = vmatprep.subr.mxu0 0.0
    %137 = vmatpush2.msra.mxu0 %v61
    %138 = vmatprep.subr.mxu0 0.0
    %139 = vmatpush2.msra.mxu0 %v60
    %140 = vmatprep.mubr.f32.mxu0 %v43
    %141 = vmatmul.mubr.f32.gmra.mxu0 %v42
    %v142 = vpop.f32.mrf.mxu0
    %v143 = vadd.f32 0.0, %v142
    %v144 = vpop.f32.mrf.mxu0
    %145 = vdwg.mxu0
    %v146 = vld [vmem:[#allocation4] sm:$0xff]
    %v147 = vld [vmem:[#allocation4 + $0x8] sm:$0xff]
    %v148 = vld [vmem:[#allocation4 + $0x10] sm:$0xff]
    %v149 = vld [vmem:[#allocation4 + $0x18] sm:$0xff]
    %v150 = vld [vmem:[#allocation4 + $0x20] sm:$0xff]
    %v151 = vld [vmem:[#allocation4 + $0x28] sm:$0xff]
    %v152 = vld [vmem:[#allocation4 + $0x30] sm:$0xff]
    %v153 = vld [vmem:[#allocation4 + $0x38] sm:$0xff]
    %v154 = vld [vmem:[#allocation4 + $0x40] sm:$0xff]
    %v155 = vld [vmem:[#allocation4 + $0x48] sm:$0xff]
    %v156 = vld [vmem:[#allocation4 + $0x50] sm:$0xff]
    %v157 = vld [vmem:[#allocation4 + $0x58] sm:$0xff]
    %v158 = vld [vmem:[#allocation4 + $0x60] sm:$0xff]
    %v159 = vld [vmem:[#allocation4 + $0x68] sm:$0xff]
    %v160 = vld [vmem:[#allocation4 + $0x70] sm:$0xff]
    %v161 = vld [vmem:[#allocation4 + $0x78] sm:$0xff]
    %v162 = vld [vmem:[#allocation4 + $0x80] sm:$0xff]
    %v163 = vld [vmem:[#allocation4 + $0x88] sm:$0xff]
    %v164 = vld [vmem:[#allocation4 + $0x90] sm:$0xff]
    %v165 = vld [vmem:[#allocation4 + $0x98] sm:$0xff]
    %v166 = vld [vmem:[#allocation4 + $0xa0] sm:$0xff]
    %v167 = vld [vmem:[#allocation4 + $0xa8] sm:$0xff]
    %v168 = vld [vmem:[#allocation4 + $0xb0] sm:$0xff]
    %v169 = vld [vmem:[#allocation4 + $0xb8] sm:$0xff]
    %v170 = vld [vmem:[#allocation4 + $0xc0] sm:$0xff]
    %v171 = vld [vmem:[#allocation4 + $0xc8] sm:$0xff]
    %v172 = vld [vmem:[#allocation4 + $0xd0] sm:$0xff]
    %v173 = vld [vmem:[#allocation4 + $0xd8] sm:$0xff]
    %v174 = vld [vmem:[#allocation4 + $0xe0] sm:$0xff]
    %v175 = vld [vmem:[#allocation4 + $0xe8] sm:$0xff]
    %v176 = vld [vmem:[#allocation4 + $0xf0] sm:$0xff]
    %v177 = vld [vmem:[#allocation4 + $0xf8] sm:$0xff]
    %178 = vmatprep.subr.mxu0 %v177
    %179 = vmatpush1.msra.mxu0 %v176
    %180 = vmatprep.subr.mxu0 %v175
    %181 = vmatpush1.msra.mxu0 %v174
    %182 = vmatprep.subr.mxu0 %v173
    %183 = vmatpush1.msra.mxu0 %v172
    %184 = vmatprep.subr.mxu0 %v171
    %185 = vmatpush1.msra.mxu0 %v170
    %186 = vmatprep.subr.mxu0 %v169
    %187 = vmatpush1.msra.mxu0 %v168
    %188 = vmatprep.subr.mxu0 %v167
    %189 = vmatpush1.msra.mxu0 %v166
    %190 = vmatprep.subr.mxu0 %v165
    %191 = vmatpush1.msra.mxu0 %v164
    %192 = vmatprep.subr.mxu0 %v163
    %193 = vmatpush1.msra.mxu0 %v162
    %194 = vmatprep.subr.mxu0 %v161
    %195 = vmatpush1.msra.mxu0 %v160
    %196 = vmatprep.subr.mxu0 %v159
    %197 = vmatpush1.msra.mxu0 %v158
    %198 = vmatprep.subr.mxu0 %v157
    %199 = vmatpush1.msra.mxu0 %v156
    %200 = vmatprep.subr.mxu0 %v155
    %201 = vmatpush1.msra.mxu0 %v154
    %202 = vmatprep.subr.mxu0 %v153
    %203 = vmatpush1.msra.mxu0 %v152
    %204 = vmatprep.subr.mxu0 %v151
    %205 = vmatpush1.msra.mxu0 %v150
    %206 = vmatprep.subr.mxu0 %v149
    %207 = vmatpush1.msra.mxu0 %v148
    %208 = vmatprep.subr.mxu0 %v147
    %209 = vmatpush1.msra.mxu0 %v146
    %210 = vmatprep.subr.mxu0 0.0
    %211 = vmatpush2.msra.mxu0 0.0
    %212 = vmatprep.subr.mxu0 0.0
    %213 = vmatpush2.msra.mxu0 0.0
    %214 = vmatprep.subr.mxu0 0.0
    %215 = vmatpush2.msra.mxu0 0.0
    %216 = vmatprep.subr.mxu0 0.0
    %217 = vmatpush2.msra.mxu0 0.0
    %218 = vmatprep.subr.mxu0 0.0
    %219 = vmatpush2.msra.mxu0 0.0
    %220 = vmatprep.subr.mxu0 0.0
    %221 = vmatpush2.msra.mxu0 0.0
    %222 = vmatprep.subr.mxu0 0.0
    %223 = vmatpush2.msra.mxu0 0.0
    %224 = vmatprep.subr.mxu0 0.0
    %225 = vmatpush2.msra.mxu0 0.0
    %226 = vmatprep.subr.mxu0 0.0
    %227 = vmatpush2.msra.mxu0 0.0
    %228 = vmatprep.subr.mxu0 0.0
    %229 = vmatpush2.msra.mxu0 0.0
    %230 = vmatprep.subr.mxu0 0.0
    %231 = vmatpush2.msra.mxu0 0.0
    %232 = vmatprep.subr.mxu0 0.0
    %233 = vmatpush2.msra.mxu0 0.0
    %234 = vmatprep.subr.mxu0 0.0
    %235 = vmatpush2.msra.mxu0 0.0
    %236 = vmatprep.subr.mxu0 0.0
    %237 = vmatpush2.msra.mxu0 0.0
    %238 = vmatprep.subr.mxu0 0.0
    %239 = vmatpush2.msra.mxu0 0.0
    %240 = vmatprep.subr.mxu0 0.0
    %241 = vmatpush2.msra.mxu0 0.0
    %242 = vmatprep.mubr.f32.mxu0 0.0
    %243 = vmatmul.mubr.f32.gmra.mxu0 %v143
    %v244 = vpop.f32.mrf.mxu0
    %v245 = vadd.f32 0.0, %v244
    %v246 = vpop.f32.mrf.mxu0
    %v247 = vadd.f32 0.0, %v246
    %248 = vdwg.mxu0
    %v249 = vadd.f32 %v42, %v245
    %v250 = vadd.f32 %v43, %v247
    %251 = vst [vmem:[%s3] sm:$0xff] %v249
    %252 = vst [vmem:[%s3 + $0x8] sm:$0xff] %v250
    // Predicated region
    $region22: #{pyramid_pooling_module.1} parent=1 // pred_check
      _
    $region23: #{pyramid_pooling_module.1} parent=1 // pred_check_branch
      %254 = sbr.rel (0) target = $region25
    $region24: #{pyramid_pooling_module.1} parent=1 // pred_region
      _
    $region25: #{pyramid_pooling_module.1} parent=1 // pred_fallthru
      _
    // Predicated region
    $region26: #{pyramid_pooling_module.1} parent=1 // pred_check
      _
    $region27: #{pyramid_pooling_module.1} parent=1 // pred_check_branch
      %256 = sbr.rel (0) target = $region29
    $region28: #{pyramid_pooling_module.1} parent=1 // pred_region
      _
    $region29: #{pyramid_pooling_module.1} parent=1 // pred_fallthru
      _
    %257 = vsyncpa [#allocation3], 1
    %258 = vsyncpa [#allocation5], 1

</llo_original>
